<compile_context>
chip_gen: v7x
topology: tpu7x:2x2x1
jax: 0.10.0
libtpu: 0.0.40
codegen_flags: <defaults>
</compile_context>

<pallas_src>
import jax
import jax.numpy as jnp
from jax import lax
from jax.experimental import pallas as pl
from jax.experimental.pallas import tpu as pltpu

EPS = 1e-12  # torch.nn.functional.normalize default eps


def mf_forward_kernel(ids_ref, p_ref, pv_ref, wp_ref, bp_ref, wct_ref,
                      out_ref, me_scratch):
    # ids_ref   : (M,)                int32, SMEM -- model ids
    # p_ref     : (num_models,1,dim)  f32,  VMEM  -- full embedding table
    # pv_ref    : (1, text_in)        bf16, VMEM  -- raw prompt embedding
    # wp_ref    : (text_in, dim)      bf16, VMEM  -- prompt_proj weight (pre-transposed)
    # bp_ref    : (1, dim)            f32,  VMEM  -- prompt_proj bias
    # wct_ref   : (C, dim)            f32,  VMEM  -- classifier weight, transposed
    # out_ref   : (M, C)              f32,  VMEM
    # me_scratch: (M, dim)            f32,  VMEM  -- gathered model embeddings
    M = me_scratch.shape[0]

    # Fused embedding gather: P[model_ids] -> me_scratch.  M is small & static,
    # so the loop unrolls at trace time; ids come from SMEM, each row is a
    # dynamic leading-axis slice of the VMEM-resident table.
    for i in range(M):
        me_scratch[pl.ds(i, 1), :] = p_ref[ids_ref[i]]

    me = me_scratch[...]
    # Row-wise L2 normalize.  rsqrt runs on the EUP (separate VLIW slot).
    ss_me = jnp.sum(me * me, axis=-1, keepdims=True)
    me_n = me * lax.rsqrt(jnp.maximum(ss_me, EPS * EPS))

    # prompt_proj: (1, text_in) @ (text_in, dim) + bias; bf16 operands on the
    # MXU, f32 accumulation.
    pe = jnp.dot(pv_ref[...], wp_ref[...],
                 preferred_element_type=jnp.float32) + bp_ref[...]
    ss_pe = jnp.sum(pe * pe, axis=-1, keepdims=True)
    pe_n = pe * lax.rsqrt(jnp.maximum(ss_pe, EPS * EPS))   # (1, dim)

    # torch .repeat(M, 1) realized by broadcasting in the subtraction.
    diff = me_n - pe_n                                     # (M, dim)

    # Bias-free classifier.  For C == 1 a cross-lane reduction beats an N=1
    # MXU matmul; for larger C fall back to the MXU.
    if wct_ref.shape[0] == 1:
        out_ref[...] = jnp.sum(diff * wct_ref[...], axis=-1, keepdims=True)
    else:
        out_ref[...] = jnp.dot(diff, wct_ref[...].T,
                               preferred_element_type=jnp.float32)


def prepare_params(P_weight, Wp, bp, Wc):
    """One-time parameter packing (do NOT re-run per forward call).

    Dominant stream (Wp) stored in bf16; tiny, precision-sensitive tensors
    stay in f32.  P gets a singleton middle axis so rows can be dynamically
    indexed on a leading (untiled) dimension inside the kernel.
    """
    num_models, dim = P_weight.shape
    return {
        "p":   P_weight.astype(jnp.float32).reshape(num_models, 1, dim),
        "wp":  Wp.astype(jnp.bfloat16),                    # (text_in, dim)
        "bp":  bp.reshape(1, dim).astype(jnp.float32),     # (1, dim)
        "wct": Wc.T.astype(jnp.float32),                   # (C, dim)
    }


@jax.jit
def mf_model_forward(params, model_ids, prompt_vec):
    """MFModel.forward(model_ids, prompt) with the prompt already embedded."""
    num_models, _, dim = params["p"].shape
    text_in = params["wp"].shape[0]
    C = params["wct"].shape[0]
    M = model_ids.shape[0]

    ids = model_ids.astype(jnp.int32)
    pv = prompt_vec.reshape(1, text_in).astype(jnp.bfloat16)

    out = pl.pallas_call(
        mf_forward_kernel,
        out_shape=jax.ShapeDtypeStruct((M, C), jnp.float32),
        in_specs=[
            pl.BlockSpec(memory_space=pltpu.MemorySpace.SMEM),   # model_ids
            pl.BlockSpec(memory_space=pltpu.MemorySpace.VMEM),   # P table
            pl.BlockSpec(memory_space=pltpu.MemorySpace.VMEM),   # prompt vec (bf16)
            pl.BlockSpec(memory_space=pltpu.MemorySpace.VMEM),   # Wp (bf16)
            pl.BlockSpec(memory_space=pltpu.MemorySpace.VMEM),   # prompt_proj bias
            pl.BlockSpec(memory_space=pltpu.MemorySpace.VMEM),   # classifier W^T
        ],
        out_specs=pl.BlockSpec(memory_space=pltpu.MemorySpace.VMEM),
        scratch_shapes=[pltpu.VMEM((M, dim), jnp.float32)],
    )(ids, params["p"], pv, params["wp"], params["bp"], params["wct"])

    return jnp.squeeze(out)   # matches torch .squeeze()


if __name__ == "__main__":
    # Small, shape-consistent config:
    #   dim=128, num_models=16, text_in=1536 (fixed by prompt_proj), num_classes=1
    dim = 128
    num_models = 16
    text_in = 1536
    num_classes = 1

    key = jax.random.PRNGKey(0)
    k_P, k_Wp, k_bp, k_Wc, k_prompt = jax.random.split(key, 5)

    # Deterministic synthetic parameters (module __init__ shapes).
    P_weight = jax.random.normal(k_P, (num_models, dim), dtype=jnp.float32)
    Wp = jax.random.normal(k_Wp, (text_in, dim), dtype=jnp.float32) * 0.02
    bp = jax.random.normal(k_bp, (dim,), dtype=jnp.float32) * 0.02
    Wc = jax.random.normal(k_Wc, (dim, num_classes), dtype=jnp.float32) * 0.1

    # TODO(synk): embedding_model._get_text_embedding is an Azure OpenAI network
    # call; the prompt embedding is taken as a plain (1536,) input vector here.
    prompt_vec = jax.random.normal(k_prompt, (text_in,), dtype=jnp.float32)

    model_ids = jnp.array([3, 7], dtype=jnp.int32)   # pred_win_rate(model_a, model_b)

    params = prepare_params(P_weight, Wp, bp, Wc)
    logits = mf_model_forward(params, model_ids, prompt_vec)
    jax.block_until_ready(logits)

    # Reference in plain JAX using the SAME bf16-rounded prompt-side operands
    # (isolates kernel correctness from the f32->bf16 weight-storage choice).
    wp_f32 = params["wp"].astype(jnp.float32)
    pv_f32 = prompt_vec.astype(jnp.bfloat16).astype(jnp.float32).reshape(1, -1)
    me = jnp.take(P_weight, model_ids, axis=0)
    me_n = me / jnp.maximum(jnp.linalg.norm(me, axis=1, keepdims=True), EPS)
    pe = jnp.dot(pv_f32, wp_f32, precision=lax.Precision.HIGHEST) + bp.reshape(1, -1)
    pe_n = pe / jnp.maximum(jnp.linalg.norm(pe, axis=1, keepdims=True), EPS)
    ref = jnp.squeeze(jnp.dot(me_n - pe_n, Wc, precision=lax.Precision.HIGHEST))
    assert jnp.allclose(logits, ref, atol=1e-3, rtol=1e-3), (logits, ref)

    # pred_win_rate equivalent: sigmoid(logits[0] - logits[1]).
    winrate = jax.nn.sigmoid(logits[0] - logits[1])
    jax.block_until_ready(winrate)

    print("KERNEL_OK")
</pallas_src>

<mosaic_0001>
module attributes {stable_mosaic.version = 11 : i64} {
  func.func @mf_forward_kernel(%arg0: memref<2xi32, #tpu.memory_space<smem>>, %arg1: memref<16x1x128xf32, #tpu.memory_space<vmem>>, %arg2: memref<1x1536xbf16, #tpu.memory_space<vmem>>, %arg3: memref<1536x128xbf16, #tpu.memory_space<vmem>>, %arg4: memref<1x128xf32, #tpu.memory_space<vmem>>, %arg5: memref<1x128xf32, #tpu.memory_space<vmem>>, %arg6: memref<2x1xf32, #tpu.memory_space<vmem>>, %arg7: memref<2x128xf32, #tpu.memory_space<vmem>>) attributes {dimension_semantics = [], scalar_prefetch = 0 : i64, scratch_operands = 1 : i64, tpu.core_type = #tpu.core_type<tc>} {
    %c0 = arith.constant 0 : index
    %0 = memref.load %arg0[%c0] : memref<2xi32, #tpu.memory_space<smem>>
    %1 = arith.index_cast %0 : i32 to index
    %c0_0 = arith.constant 0 : index
    %c0_1 = arith.constant 0 : index
    %2 = vector.load %arg1[%1, %c0_0, %c0_1] : memref<16x1x128xf32, #tpu.memory_space<vmem>>, vector<1x1x128xf32>
    %3 = vector.shape_cast %2 : vector<1x1x128xf32> to vector<1x128xf32>
    %c0_2 = arith.constant 0 : index
    %c0_3 = arith.constant 0 : index
    %4 = vector.load %arg7[%c0_2, %c0_3] : memref<2x128xf32, #tpu.memory_space<vmem>>, vector<1x128xf32>
    tpu.vector_store %arg7[%c0_2, %c0_3], %3 {strides = array<i32>} : memref<2x128xf32, #tpu.memory_space<vmem>>, vector<1x128xf32>,
    %c1 = arith.constant 1 : index
    %5 = memref.load %arg0[%c1] : memref<2xi32, #tpu.memory_space<smem>>
    %6 = arith.index_cast %5 : i32 to index
    %c0_4 = arith.constant 0 : index
    %c0_5 = arith.constant 0 : index
    %7 = vector.load %arg1[%6, %c0_4, %c0_5] : memref<16x1x128xf32, #tpu.memory_space<vmem>>, vector<1x1x128xf32>
    %8 = vector.shape_cast %7 : vector<1x1x128xf32> to vector<1x128xf32>
    %c1_6 = arith.constant 1 : index
    %c0_7 = arith.constant 0 : index
    %9 = vector.load %arg7[%c1_6, %c0_7] : memref<2x128xf32, #tpu.memory_space<vmem>>, vector<1x128xf32>
    tpu.vector_store %arg7[%c1_6, %c0_7], %8 {strides = array<i32>} : memref<2x128xf32, #tpu.memory_space<vmem>>, vector<1x128xf32>,
    %c0_8 = arith.constant 0 : index
    %c0_9 = arith.constant 0 : index
    %10 = vector.load %arg7[%c0_8, %c0_9] : memref<2x128xf32, #tpu.memory_space<vmem>>, vector<2x128xf32>
    %11 = arith.mulf %10, %10 : vector<2x128xf32>
    %cst = arith.constant dense<0.000000e+00> : vector<2xf32>
    %12 = vector.multi_reduction <add>, %11, %cst [1] : vector<2x128xf32> to vector<2xf32>
    %13 = vector.shape_cast %12 : vector<2xf32> to vector<2x1xf32>
    %cst_10 = arith.constant 1.000000e-24 : f32
    %14 = vector.broadcast %cst_10 : f32 to vector<2x1xf32>
    %15 = arith.maximumf %13, %14 : vector<2x1xf32>
    %16 = math.rsqrt %15 : vector<2x1xf32>
    %17 = vector.broadcast %16 : vector<2x1xf32> to vector<2x128xf32>
    %18 = arith.mulf %10, %17 : vector<2x128xf32>
    %c0_11 = arith.constant 0 : index
    %c0_12 = arith.constant 0 : index
    %19 = vector.load %arg2[%c0_11, %c0_12] : memref<1x1536xbf16, #tpu.memory_space<vmem>>, vector<1x1536xbf16>
    %c0_13 = arith.constant 0 : index
    %c0_14 = arith.constant 0 : index
    %20 = vector.load %arg3[%c0_13, %c0_14] : memref<1536x128xbf16, #tpu.memory_space<vmem>>, vector<1536x128xbf16>
    %cst_15 = arith.constant dense<0.000000e+00> : vector<1x128xf32>
    %21 = tpu.matmul %19, %20, %cst_15 {dimension_numbers = #tpu.dot_dimension_numbers<[1], [0], [0], [1], [0, 0, 1, 1], [], []>} : vector<1x1536xbf16>, vector<1536x128xbf16>, vector<1x128xf32> -> vector<1x128xf32>
    %c0_16 = arith.constant 0 : index
    %c0_17 = arith.constant 0 : index
    %22 = vector.load %arg4[%c0_16, %c0_17] : memref<1x128xf32, #tpu.memory_space<vmem>>, vector<1x128xf32>
    %23 = arith.addf %21, %22 : vector<1x128xf32>
    %24 = arith.mulf %23, %23 : vector<1x128xf32>
    %cst_18 = arith.constant dense<0.000000e+00> : vector<1xf32>
    %25 = vector.multi_reduction <add>, %24, %cst_18 [1] : vector<1x128xf32> to vector<1xf32>
    %26 = vector.shape_cast %25 : vector<1xf32> to vector<1x1xf32>
    %cst_19 = arith.constant 1.000000e-24 : f32
    %27 = vector.broadcast %cst_19 : f32 to vector<1x1xf32>
    %28 = arith.maximumf %26, %27 : vector<1x1xf32>
    %29 = math.rsqrt %28 : vector<1x1xf32>
    %30 = vector.broadcast %29 : vector<1x1xf32> to vector<1x128xf32>
    %31 = arith.mulf %23, %30 : vector<1x128xf32>
    %32 = vector.broadcast %31 : vector<1x128xf32> to vector<2x128xf32>
    %33 = arith.subf %18, %32 : vector<2x128xf32>
    %c0_20 = arith.constant 0 : index
    %c0_21 = arith.constant 0 : index
    %34 = vector.load %arg5[%c0_20, %c0_21] : memref<1x128xf32, #tpu.memory_space<vmem>>, vector<1x128xf32>
    %35 = vector.broadcast %34 : vector<1x128xf32> to vector<2x128xf32>
    %36 = arith.mulf %33, %35 : vector<2x128xf32>
    %cst_22 = arith.constant dense<0.000000e+00> : vector<2xf32>
    %37 = vector.multi_reduction <add>, %36, %cst_22 [1] : vector<2x128xf32> to vector<2xf32>
    %38 = vector.shape_cast %37 : vector<2xf32> to vector<2x1xf32>
    %c0_23 = arith.constant 0 : index
    %c0_24 = arith.constant 0 : index
    %39 = vector.load %arg6[%c0_23, %c0_24] : memref<2x1xf32, #tpu.memory_space<vmem>>, vector<2x1xf32>
    tpu.vector_store %arg6[%c0_23, %c0_24], %38 {strides = array<i32>} : memref<2x1xf32, #tpu.memory_space<vmem>>, vector<2x1xf32>,
    return
  }
}

</mosaic_0001>

<llo_original>
// kernel: mf_model_forward.1
$region0: #{mf_model_forward.1}
  #allocation0 [shape = 'u32[]', space=smem, size = 0x4, offset = 0x4, fixed_abs, tag = 'smem constant byte address 0x4 - core index']
  #allocation1 [shape = 'u32[144,128]{1,0:T(1,128)}', space=vmem, size = 0x12000, scoped, tag = 'internal scratch']
  #allocation2 [shape = 'f32[2,128]{1,0:T(2,128)}', space=vmem, size = 0x400, scoped, tag = 'scratch operand']
  %s0 = inlined_call_operand.vmem [shape: s32[2], index: 0, kind: input, shape index: {}]
  %s1 = inlined_call_operand.vmem [shape: f32[16,1,128], index: 1, kind: input, shape index: {}]
  %s2 = inlined_call_operand.vmem [shape: bf16[1,1536], index: 2, kind: input, shape index: {}]
  %s3 = inlined_call_operand.hbm [shape: bf16[1536,128], index: 3, kind: input, shape index: {}]
  %s4 = inlined_call_operand.vmem [shape: f32[1,128], index: 4, kind: input, shape index: {}]
  %s5 = inlined_call_operand.vmem [shape: f32[1,128], index: 5, kind: input, shape index: {}]
  %s6 = inlined_call_operand.vmem [shape: f32[2,1], index: 6, kind: output, shape index: {}]
  %s7 = sld [smem:[#allocation0]]
  $region42: #{mf_model_forward.1} parent=0
    _
  %s9 = ssub.s32 1, %s7
  %s10 = scalar_select 0, %s9, %s7
  $region1: #{mf_model_forward.1} parent=0
    #allocation3 [shape = 'u8[512]{0}', space=smem, size = 0x200, scoped, tag = 'input window, operand 0, single buffered']
    #allocation4 [shape = 's32[1]{0}', space=sflag, size = 0x4, scoped, tag = 'scoped memory for mf_model_forward.1']
    #allocation5 [shape = 's32[1]{0}', space=sflag, size = 0x4, scoped, tag = 'scoped memory for mf_model_forward.1']
    #allocation6 [shape = 'u8[393216]{0}', space=vmem, size = 0x60000, scoped, tag = 'input window, operand 3, single buffered']
    %11 = vsyncpa [#allocation5], 0
    %12 = vsyncpa [#allocation4], 0
    // Predicated region
    $region2: #{mf_model_forward.1} parent=1 // pred_check
      _
    $region3: #{mf_model_forward.1} parent=1 // pred_check_branch
      %14 = sbr.rel (0) target = $region5
    $region4: #{mf_model_forward.1} parent=1 // pred_region
      %s16 = ssub.s32 16, 16
      %17 = vsyncadd [#allocation5], %s16
      %s19 = sshll.u32 %s0, 4
      %s20 = int_to_ptr.vmem [resolvable:$true] %s19
      %22 = dma.vmem_to_smem %s20, 16, [#allocation3], [#allocation5]
    $region5: #{mf_model_forward.1} parent=1 // pred_fallthru
      _
    // Predicated region
    $region6: #{mf_model_forward.1} parent=1 // pred_check
      _
    $region7: #{mf_model_forward.1} parent=1 // pred_check_branch
      %24 = sbr.rel (0) target = $region9
    $region8: #{mf_model_forward.1} parent=1 // pred_region
      _
    $region9: #{mf_model_forward.1} parent=1 // pred_fallthru
      _
    // Predicated region
    $region10: #{mf_model_forward.1} parent=1 // pred_check
      _
    $region11: #{mf_model_forward.1} parent=1 // pred_check_branch
      %26 = sbr.rel (0) target = $region13
    $region12: #{mf_model_forward.1} parent=1 // pred_region
      _
    $region13: #{mf_model_forward.1} parent=1 // pred_fallthru
      _
    // Predicated region
    $region14: #{mf_model_forward.1} parent=1 // pred_check
      _
    $region15: #{mf_model_forward.1} parent=1 // pred_check_branch
      %28 = sbr.rel (0) target = $region17
    $region16: #{mf_model_forward.1} parent=1 // pred_region
      %s30 = ssub.s32 12288, 12288
      %31 = vsyncadd [#allocation4], %s30
      %s32 = sshll.u32 [#allocation6], 4
      %s33 = int_to_ptr.vmem [resolvable:$true] %s32
      %38 = dma.hbm_to_vmem [thread:$0]  %s3, 12288, %s33, [#allocation4], 64, 64, 4
    $region17: #{mf_model_forward.1} parent=1 // pred_fallthru
      _
    // Predicated region
    $region18: #{mf_model_forward.1} parent=1 // pred_check
      _
    $region19: #{mf_model_forward.1} parent=1 // pred_check_branch
      %40 = sbr.rel (0) target = $region21
    $region20: #{mf_model_forward.1} parent=1 // pred_region
      _
    $region21: #{mf_model_forward.1} parent=1 // pred_fallthru
      _
    // Predicated region
    $region22: #{mf_model_forward.1} parent=1 // pred_check
      _
    $region23: #{mf_model_forward.1} parent=1 // pred_check_branch
      %42 = sbr.rel (0) target = $region25
    $region24: #{mf_model_forward.1} parent=1 // pred_region
      _
    $region25: #{mf_model_forward.1} parent=1 // pred_fallthru
      _
    // Predicated region
    $region26: #{mf_model_forward.1} parent=1 // pred_check
      _
    $region27: #{mf_model_forward.1} parent=1 // pred_check_branch
      %44 = sbr.rel (0) target = $region29
    $region28: #{mf_model_forward.1} parent=1 // pred_region
      %45 = dma.done [#allocation5], 16
    $region29: #{mf_model_forward.1} parent=1 // pred_fallthru
      _
    // Predicated region
    $region30: #{mf_model_forward.1} parent=1 // pred_check
      _
    $region31: #{mf_model_forward.1} parent=1 // pred_check_branch
      %47 = sbr.rel (0) target = $region33
    $region32: #{mf_model_forward.1} parent=1 // pred_region
      %48 = dma.done [#allocation4], 12288
    $region33: #{mf_model_forward.1} parent=1 // pred_fallthru
      _
    %49 = sfence
    %s51 = sld [smem:[#allocation3]]
    %s52 = scalar_lea.vmem %s1, %s51
    %v53 = vld [vmem:[%s52] sm:$0x1]
    %54 = vst [vmem:[#allocation2] sm:$0x1] %v53
    %s55 = sld [smem:[#allocation3 + $0x1]]
    %s56 = scalar_lea.vmem %s1, %s55
    %v57 = vld [vmem:[%s56] sm:$0x1]
    %58 = vst [vmem:[#allocation2 + $0x1] sm:$0x1] %v57
    %v59 = vld [vmem:[#allocation2] sm:$0x3]
    %v60 = vmul.f32 %v59, %v59
    %vm61 = vcmask 1041408
    %v62 = vsel %vm61, %v60, 0.0
    %63 = vadd.xlane.f32.xlu0 %v62
    %v64 = vpop.xlane.xlu0 %63
    %v65 = vmax.f32 %v64, 1e-24
    %v66 = vrsqrt.pop %v65
    %v67 = vmul.f32 %v59, %v66
    %v68 = vld [vmem:[%s2] sm:$0xff]
    %v69 = vld [vmem:[%s2 + $0x8] sm:$0xf]
    %v70 = vld [vmem:[#allocation6] sm:$0xf]
    %v71 = vld [vmem:[#allocation6 + $0x4] sm:$0xf]
    %v72 = vld [vmem:[#allocation6 + $0x8] sm:$0xf]
    %v73 = vld [vmem:[#allocation6 + $0xc] sm:$0xf]
    %v74 = vld [vmem:[#allocation6 + $0x10] sm:$0xf]
    %v75 = vld [vmem:[#allocation6 + $0x14] sm:$0xf]
    %v76 = vld [vmem:[#allocation6 + $0x18] sm:$0xf]
    %v77 = vld [vmem:[#allocation6 + $0x1c] sm:$0xf]
    %v78 = vld [vmem:[#allocation6 + $0x20] sm:$0xf]
    %v79 = vld [vmem:[#allocation6 + $0x24] sm:$0xf]
    %v80 = vld [vmem:[#allocation6 + $0x28] sm:$0xf]
    %v81 = vld [vmem:[#allocation6 + $0x2c] sm:$0xf]
    %v82 = vld [vmem:[#allocation6 + $0x30] sm:$0xf]
    %v83 = vld [vmem:[#allocation6 + $0x34] sm:$0xf]
    %v84 = vld [vmem:[#allocation6 + $0x38] sm:$0xf]
    %v85 = vld [vmem:[#allocation6 + $0x3c] sm:$0xf]
    %v86 = vld [vmem:[#allocation6 + $0x40] sm:$0xf]
    %v87 = vld [vmem:[#allocation6 + $0x44] sm:$0xf]
    %v88 = vld [vmem:[#allocation6 + $0x48] sm:$0xf]
    %v89 = vld [vmem:[#allocation6 + $0x4c] sm:$0xf]
    %v90 = vld [vmem:[#allocation6 + $0x50] sm:$0xf]
    %v91 = vld [vmem:[#allocation6 + $0x54] sm:$0xf]
    %v92 = vld [vmem:[#allocation6 + $0x58] sm:$0xf]
    %v93 = vld [vmem:[#allocation6 + $0x5c] sm:$0xf]
    %v94 = vld [vmem:[#allocation6 + $0x60] sm:$0xf]
    %v95 = vld [vmem:[#allocation6 + $0x64] sm:$0xf]
    %v96 = vld [vmem:[#allocation6 + $0x68] sm:$0xf]
    %v97 = vld [vmem:[#allocation6 + $0x6c] sm:$0xf]
    %v98 = vld [vmem:[#allocation6 + $0x70] sm:$0xf]
    %v99 = vld [vmem:[#allocation6 + $0x74] sm:$0xf]
    %v100 = vld [vmem:[#allocation6 + $0x78] sm:$0xf]
    %v101 = vld [vmem:[#allocation6 + $0x7c] sm:$0xf]
    %v102 = vld [vmem:[#allocation6 + $0x80] sm:$0xf]
    %v103 = vld [vmem:[#allocation6 + $0x84] sm:$0xf]
    %v104 = vld [vmem:[#allocation6 + $0x88] sm:$0xf]
    %v105 = vld [vmem:[#allocation6 + $0x8c] sm:$0xf]
    %v106 = vld [vmem:[#allocation6 + $0x90] sm:$0xf]
    %v107 = vld [vmem:[#allocation6 + $0x94] sm:$0xf]
    %v108 = vld [vmem:[#allocation6 + $0x98] sm:$0xf]
    %v109 = vld [vmem:[#allocation6 + $0x9c] sm:$0xf]
    %v110 = vld [vmem:[#allocation6 + $0xa0] sm:$0xf]
    %v111 = vld [vmem:[#allocation6 + $0xa4] sm:$0xf]
    %v112 = vld [vmem:[#allocation6 + $0xa8] sm:$0xf]
    %v113 = vld [vmem:[#allocation6 + $0xac] sm:$0xf]
    %v114 = vld [vmem:[#allocation6 + $0xb0] sm:$0xf]
    %v115 = vld [vmem:[#allocation6 + $0xb4] sm:$0xf]
    %v116 = vld [vmem:[#allocation6 + $0xb8] sm:$0xf]
    %v117 = vld [vmem:[#allocation6 + $0xbc] sm:$0xf]
    %v118 = vld [vmem:[#allocation6 + $0xc0] sm:$0xf]
    %v119 = vld [vmem:[#allocation6 + $0xc4] sm:$0xf]
    %v120 = vld [vmem:[#allocation6 + $0xc8] sm:$0xf]
    %v121 = vld [vmem:[#allocation6 + $0xcc] sm:$0xf]
    %v122 = vld [vmem:[#allocation6 + $0xd0] sm:$0xf]
    %v123 = vld [vmem:[#allocation6 + $0xd4] sm:$0xf]
    %v124 = vld [vmem:[#allocation6 + $0xd8] sm:$0xf]
    %v125 = vld [vmem:[#allocation6 + $0xdc] sm:$0xf]
    %v126 = vld [vmem:[#allocation6 + $0xe0] sm:$0xf]
    %v127 = vld [vmem:[#allocation6 + $0xe4] sm:$0xf]
    %v128 = vld [vmem:[#allocation6 + $0xe8] sm:$0xf]
    %v129 = vld [vmem:[#allocation6 + $0xec] sm:$0xf]
    %v130 = vld [vmem:[#allocation6 + $0xf0] sm:$0xf]
    %v131 = vld [vmem:[#allocation6 + $0xf4] sm:$0xf]
    %v132 = vld [vmem:[#allocation6 + $0xf8] sm:$0xf]
    %v133 = vld [vmem:[#allocation6 + $0xfc] sm:$0xf]
    %v134 = vld [vmem:[#allocation6 + $0x100] sm:$0xf]
    %v135 = vld [vmem:[#allocation6 + $0x104] sm:$0xf]
    %v136 = vld [vmem:[#allocation6 + $0x108] sm:$0xf]
    %v137 = vld [vmem:[#allocation6 + $0x10c] sm:$0xf]
    %v138 = vld [vmem:[#allocation6 + $0x110] sm:$0xf]
    %v139 = vld [vmem:[#allocation6 + $0x114] sm:$0xf]
    %v140 = vld [vmem:[#allocation6 + $0x118] sm:$0xf]
    %v141 = vld [vmem:[#allocation6 + $0x11c] sm:$0xf]
    %v142 = vld [vmem:[#allocation6 + $0x120] sm:$0xf]
    %v143 = vld [vmem:[#allocation6 + $0x124] sm:$0xf]
    %v144 = vld [vmem:[#allocation6 + $0x128] sm:$0xf]
    %v145 = vld [vmem:[#allocation6 + $0x12c] sm:$0xf]
    %v146 = vld [vmem:[#allocation6 + $0x130] sm:$0xf]
    %v147 = vld [vmem:[#allocation6 + $0x134] sm:$0xf]
    %v148 = vld [vmem:[#allocation6 + $0x138] sm:$0xf]
    %v149 = vld [vmem:[#allocation6 + $0x13c] sm:$0xf]
    %v150 = vld [vmem:[#allocation6 + $0x140] sm:$0xf]
    %v151 = vld [vmem:[#allocation6 + $0x144] sm:$0xf]
    %v152 = vld [vmem:[#allocation6 + $0x148] sm:$0xf]
    %v153 = vld [vmem:[#allocation6 + $0x14c] sm:$0xf]
    %v154 = vld [vmem:[#allocation6 + $0x150] sm:$0xf]
    %v155 = vld [vmem:[#allocation6 + $0x154] sm:$0xf]
    %v156 = vld [vmem:[#allocation6 + $0x158] sm:$0xf]
    %v157 = vld [vmem:[#allocation6 + $0x15c] sm:$0xf]
    %v158 = vld [vmem:[#allocation6 + $0x160] sm:$0xf]
    %v159 = vld [vmem:[#allocation6 + $0x164] sm:$0xf]
    %v160 = vld [vmem:[#allocation6 + $0x168] sm:$0xf]
    %v161 = vld [vmem:[#allocation6 + $0x16c] sm:$0xf]
    %v162 = vld [vmem:[#allocation6 + $0x170] sm:$0xf]
    %v163 = vld [vmem:[#allocation6 + $0x174] sm:$0xf]
    %v164 = vld [vmem:[#allocation6 + $0x178] sm:$0xf]
    %v165 = vld [vmem:[#allocation6 + $0x17c] sm:$0xf]
    %v166 = vld [vmem:[#allocation6 + $0x180] sm:$0xf]
    %v167 = vld [vmem:[#allocation6 + $0x184] sm:$0xf]
    %v168 = vld [vmem:[#allocation6 + $0x188] sm:$0xf]
    %v169 = vld [vmem:[#allocation6 + $0x18c] sm:$0xf]
    %v170 = vld [vmem:[#allocation6 + $0x190] sm:$0xf]
    %v171 = vld [vmem:[#allocation6 + $0x194] sm:$0xf]
    %v172 = vld [vmem:[#allocation6 + $0x198] sm:$0xf]
    %v173 = vld [vmem:[#allocation6 + $0x19c] sm:$0xf]
    %v174 = vld [vmem:[#allocation6 + $0x1a0] sm:$0xf]
    %v175 = vld [vmem:[#allocation6 + $0x1a4] sm:$0xf]
    %v176 = vld [vmem:[#allocation6 + $0x1a8] sm:$0xf]
    %v177 = vld [vmem:[#allocation6 + $0x1ac] sm:$0xf]
    %v178 = vld [vmem:[#allocation6 + $0x1b0] sm:$0xf]
    %v179 = vld [vmem:[#allocation6 + $0x1b4] sm:$0xf]
    %v180 = vld [vmem:[#allocation6 + $0x1b8] sm:$0xf]
    %v181 = vld [vmem:[#allocation6 + $0x1bc] sm:$0xf]
    %v182 = vld [vmem:[#allocation6 + $0x1c0] sm:$0xf]
    %v183 = vld [vmem:[#allocation6 + $0x1c4] sm:$0xf]
    %v184 = vld [vmem:[#allocation6 + $0x1c8] sm:$0xf]
    %v185 = vld [vmem:[#allocation6 + $0x1cc] sm:$0xf]
    %v186 = vld [vmem:[#allocation6 + $0x1d0] sm:$0xf]
    %v187 = vld [vmem:[#allocation6 + $0x1d4] sm:$0xf]
    %v188 = vld [vmem:[#allocation6 + $0x1d8] sm:$0xf]
    %v189 = vld [vmem:[#allocation6 + $0x1dc] sm:$0xf]
    %v190 = vld [vmem:[#allocation6 + $0x1e0] sm:$0xf]
    %v191 = vld [vmem:[#allocation6 + $0x1e4] sm:$0xf]
    %v192 = vld [vmem:[#allocation6 + $0x1e8] sm:$0xf]
    %v193 = vld [vmem:[#allocation6 + $0x1ec] sm:$0xf]
    %v194 = vld [vmem:[#allocation6 + $0x1f0] sm:$0xf]
    %v195 = vld [vmem:[#allocation6 + $0x1f4] sm:$0xf]
    %v196 = vld [vmem:[#allocation6 + $0x1f8] sm:$0xf]
    %v197 = vld [vmem:[#allocation6 + $0x1fc] sm:$0xf]
    %v198 = vld [vmem:[#allocation6 + $0x200] sm:$0xf]
    %v199 = vld [vmem:[#allocation6 + $0x204] sm:$0xf]
    %v200 = vld [vmem:[#allocation6 + $0x208] sm:$0xf]
    %v201 = vld [vmem:[#allocation6 + $0x20c] sm:$0xf]
    %v202 = vld [vmem:[#allocation6 + $0x210] sm:$0xf]
    %v203 = vld [vmem:[#allocation6 + $0x214] sm:$0xf]
    %v204 = vld [vmem:[#allocation6 + $0x218] sm:$0xf]
    %v205 = vld [vmem:[#allocation6 + $0x21c] sm:$0xf]
    %v206 = vld [vmem:[#allocation6 + $0x220] sm:$0xf]
    %v207 = vld [vmem:[#allocation6 + $0x224] sm:$0xf]
    %v208 = vld [vmem:[#allocation6 + $0x228] sm:$0xf]
    %v209 = vld [vmem:[#allocation6 + $0x22c] sm:$0xf]
    %v210 = vld [vmem:[#allocation6 + $0x230] sm:$0xf]
    %v211 = vld [vmem:[#allocation6 + $0x234] sm:$0xf]
    %v212 = vld [vmem:[#allocation6 + $0x238] sm:$0xf]
    %v213 = vld [vmem:[#allocation6 + $0x23c] sm:$0xf]
    %v214 = vld [vmem:[#allocation6 + $0x240] sm:$0xf]
    %v215 = vld [vmem:[#allocation6 + $0x244] sm:$0xf]
    %v216 = vld [vmem:[#allocation6 + $0x248] sm:$0xf]
    %v217 = vld [vmem:[#allocation6 + $0x24c] sm:$0xf]
    %v218 = vld [vmem:[#allocation6 + $0x250] sm:$0xf]
    %v219 = vld [vmem:[#allocation6 + $0x254] sm:$0xf]
    %v220 = vld [vmem:[#allocation6 + $0x258] sm:$0xf]
    %v221 = vld [vmem:[#allocation6 + $0x25c] sm:$0xf]
    %v222 = vld [vmem:[#allocation6 + $0x260] sm:$0xf]
    %v223 = vld [vmem:[#allocation6 + $0x264] sm:$0xf]
    %v224 = vld [vmem:[#allocation6 + $0x268] sm:$0xf]
    %v225 = vld [vmem:[#allocation6 + $0x26c] sm:$0xf]
    %v226 = vld [vmem:[#allocation6 + $0x270] sm:$0xf]
    %v227 = vld [vmem:[#allocation6 + $0x274] sm:$0xf]
    %v228 = vld [vmem:[#allocation6 + $0x278] sm:$0xf]
    %v229 = vld [vmem:[#allocation6 + $0x27c] sm:$0xf]
    %v230 = vld [vmem:[#allocation6 + $0x280] sm:$0xf]
    %v231 = vld [vmem:[#allocation6 + $0x284] sm:$0xf]
    %v232 = vld [vmem:[#allocation6 + $0x288] sm:$0xf]
    %v233 = vld [vmem:[#allocation6 + $0x28c] sm:$0xf]
    %v234 = vld [vmem:[#allocation6 + $0x290] sm:$0xf]
    %v235 = vld [vmem:[#allocation6 + $0x294] sm:$0xf]
    %v236 = vld [vmem:[#allocation6 + $0x298] sm:$0xf]
    %v237 = vld [vmem:[#allocation6 + $0x29c] sm:$0xf]
    %v238 = vld [vmem:[#allocation6 + $0x2a0] sm:$0xf]
    %v239 = vld [vmem:[#allocation6 + $0x2a4] sm:$0xf]
    %v240 = vld [vmem:[#allocation6 + $0x2a8] sm:$0xf]
    %v241 = vld [vmem:[#allocation6 + $0x2ac] sm:$0xf]
    %v242 = vld [vmem:[#allocation6 + $0x2b0] sm:$0xf]
    %v243 = vld [vmem:[#allocation6 + $0x2b4] sm:$0xf]
    %v244 = vld [vmem:[#allocation6 + $0x2b8] sm:$0xf]
    %v245 = vld [vmem:[#allocation6 + $0x2bc] sm:$0xf]
    %v246 = vld [vmem:[#allocation6 + $0x2c0] sm:$0xf]
    %v247 = vld [vmem:[#allocation6 + $0x2c4] sm:$0xf]
    %v248 = vld [vmem:[#allocation6 + $0x2c8] sm:$0xf]
    %v249 = vld [vmem:[#allocation6 + $0x2cc] sm:$0xf]
    %v250 = vld [vmem:[#allocation6 + $0x2d0] sm:$0xf]
    %v251 = vld [vmem:[#allocation6 + $0x2d4] sm:$0xf]
    %v252 = vld [vmem:[#allocation6 + $0x2d8] sm:$0xf]
    %v253 = vld [vmem:[#allocation6 + $0x2dc] sm:$0xf]
    %v254 = vld [vmem:[#allocation6 + $0x2e0] sm:$0xf]
    %v255 = vld [vmem:[#allocation6 + $0x2e4] sm:$0xf]
    %v256 = vld [vmem:[#allocation6 + $0x2e8] sm:$0xf]
    %v257 = vld [vmem:[#allocation6 + $0x2ec] sm:$0xf]
    %v258 = vld [vmem:[#allocation6 + $0x2f0] sm:$0xf]
    %v259 = vld [vmem:[#allocation6 + $0x2f4] sm:$0xf]
    %v260 = vld [vmem:[#allocation6 + $0x2f8] sm:$0xf]
    %v261 = vld [vmem:[#allocation6 + $0x2fc] sm:$0xf]
    %v262 = vld [vmem:[%s4] sm:$0x1]
    %v265 = vcombine.high %v68, %v68
    %v267 = vunpack.c.l.s4 1966171168
    %v268 = vunpack.c.0.s8 %v267
    %v269 = vlaneseq
    %v270 = vshrl.u32 %v269, 7
    %v271 = vsub.s32 %v268, %v270
    %v272 = vrot.slane %v68, %v271
    %v274 = vunpack.c.l.s4 1966171168
    %v275 = vunpack.c.0.s8 %v274
    %v276 = vlaneseq
    %v277 = vshrl.u32 %v276, 7
    %v278 = vsub.s32 %v275, %v277
    %v279 = vrot.slane %v265, %v278
    %v280 = vcombine.high %v272, %v272
    %v281 = vcombine.high %v279, %v279
    %v283 = vunpack.c.l.s4 1966171168
    %v284 = vunpack.c.0.s8 %v283
    %v285 = vlaneseq
    %v286 = vshrl.u32 %v285, 7
    %v287 = vsub.s32 %v284, %v286
    %v288 = vrot.slane %v272, %v287
    %v290 = vunpack.c.l.s4 1966171168
    %v291 = vunpack.c.0.s8 %v290
    %v292 = vlaneseq
    %v293 = vshrl.u32 %v292, 7
    %v294 = vsub.s32 %v291, %v293
    %v295 = vrot.slane %v279, %v294
    %v297 = vunpack.c.l.s4 1966171168
    %v298 = vunpack.c.0.s8 %v297
    %v299 = vlaneseq
    %v300 = vshrl.u32 %v299, 7
    %v301 = vsub.s32 %v298, %v300
    %v302 = vrot.slane %v280, %v301
    %v304 = vunpack.c.l.s4 1966171168
    %v305 = vunpack.c.0.s8 %v304
    %v306 = vlaneseq
    %v307 = vshrl.u32 %v306, 7
    %v308 = vsub.s32 %v305, %v307
    %v309 = vrot.slane %v281, %v308
    %v310 = vcombine.high %v288, %v288
    %v311 = vcombine.high %v295, %v295
    %v312 = vcombine.high %v302, %v302
    %v313 = vcombine.high %v309, %v309
    %v315 = vunpack.c.l.s4 1966171168
    %v316 = vunpack.c.0.s8 %v315
    %v317 = vlaneseq
    %v318 = vshrl.u32 %v317, 7
    %v319 = vsub.s32 %v316, %v318
    %v320 = vrot.slane %v69, %v319
    %v321 = vcombine.high %v320, %v320
    %v323 = vunpack.c.l.s4 1966171168
    %v324 = vunpack.c.0.s8 %v323
    %v325 = vlaneseq
    %v326 = vshrl.u32 %v325, 7
    %v327 = vsub.s32 %v324, %v326
    %v328 = vrot.slane %v320, %v327
    %v330 = vunpack.c.l.s4 1966171168
    %v331 = vunpack.c.0.s8 %v330
    %v332 = vlaneseq
    %v333 = vshrl.u32 %v332, 7
    %v334 = vsub.s32 %v331, %v333
    %v335 = vrot.slane %v321, %v334
    %v336 = vcombine.high %v328, %v328
    %v337 = vcombine.high %v335, %v335
    %v542 = vunpack.c.l.b16 %v70
    %v543 = vunpack.c.l.b16 %v71
    %v544 = vunpack.c.l.b16 %v72
    %v545 = vunpack.c.l.b16 %v73
    %v546 = vunpack.c.l.b16 %v74
    %v547 = vunpack.c.l.b16 %v75
    %v548 = vunpack.c.l.b16 %v76
    %v549 = vunpack.c.l.b16 %v77
    %v550 = vunpack.c.l.b16 %v78
    %v551 = vunpack.c.l.b16 %v79
    %v552 = vunpack.c.l.b16 %v80
    %v553 = vunpack.c.l.b16 %v81
    %v554 = vunpack.c.l.b16 %v82
    %v555 = vunpack.c.l.b16 %v83
    %v556 = vunpack.c.l.b16 %v84
    %v557 = vunpack.c.l.b16 %v85
    %v558 = vunpack.c.l.b16 %v86
    %v559 = vunpack.c.l.b16 %v87
    %v560 = vunpack.c.l.b16 %v88
    %v561 = vunpack.c.l.b16 %v89
    %v562 = vunpack.c.l.b16 %v90
    %v563 = vunpack.c.l.b16 %v91
    %v564 = vunpack.c.l.b16 %v92
    %v565 = vunpack.c.l.b16 %v93
    %v566 = vunpack.c.l.b16 %v94
    %v567 = vunpack.c.l.b16 %v95
    %v568 = vunpack.c.l.b16 %v96
    %v569 = vunpack.c.l.b16 %v97
    %v570 = vunpack.c.l.b16 %v98
    %v571 = vunpack.c.l.b16 %v99
    %v572 = vunpack.c.l.b16 %v100
    %v573 = vunpack.c.l.b16 %v101
    %v574 = vunpack.c.l.b16 %v102
    %v575 = vunpack.c.l.b16 %v103
    %v576 = vunpack.c.l.b16 %v104
    %v577 = vunpack.c.l.b16 %v105
    %v578 = vunpack.c.l.b16 %v106
    %v579 = vunpack.c.l.b16 %v107
    %v580 = vunpack.c.l.b16 %v108
    %v581 = vunpack.c.l.b16 %v109
    %v582 = vunpack.c.l.b16 %v110
    %v583 = vunpack.c.l.b16 %v111
    %v584 = vunpack.c.l.b16 %v112
    %v585 = vunpack.c.l.b16 %v113
    %v586 = vunpack.c.l.b16 %v114
    %v587 = vunpack.c.l.b16 %v115
    %v588 = vunpack.c.l.b16 %v116
    %v589 = vunpack.c.l.b16 %v117
    %v590 = vunpack.c.l.b16 %v118
    %v591 = vunpack.c.l.b16 %v119
    %v592 = vunpack.c.l.b16 %v120
    %v593 = vunpack.c.l.b16 %v121
    %v594 = vunpack.c.l.b16 %v122
    %v595 = vunpack.c.l.b16 %v123
    %v596 = vunpack.c.l.b16 %v124
    %v597 = vunpack.c.l.b16 %v125
    %v598 = vunpack.c.l.b16 %v126
    %v599 = vunpack.c.l.b16 %v127
    %v600 = vunpack.c.l.b16 %v128
    %v601 = vunpack.c.l.b16 %v129
    %v602 = vunpack.c.l.b16 %v130
    %v603 = vunpack.c.l.b16 %v131
    %v604 = vunpack.c.l.b16 %v132
    %v605 = vunpack.c.l.b16 %v133
    %v606 = vunpack.c.l.b16 %v134
    %v607 = vunpack.c.l.b16 %v135
    %v608 = vunpack.c.l.b16 %v136
    %v609 = vunpack.c.l.b16 %v137
    %v610 = vunpack.c.l.b16 %v138
    %v611 = vunpack.c.l.b16 %v139
    %v612 = vunpack.c.l.b16 %v140
    %v613 = vunpack.c.l.b16 %v141
    %v614 = vunpack.c.l.b16 %v142
    %v615 = vunpack.c.l.b16 %v143
    %v616 = vunpack.c.l.b16 %v144
    %v617 = vunpack.c.l.b16 %v145
    %v618 = vunpack.c.l.b16 %v146
    %v619 = vunpack.c.l.b16 %v147
    %v620 = vunpack.c.l.b16 %v148
    %v621 = vunpack.c.l.b16 %v149
    %v622 = vunpack.c.l.b16 %v150
    %v623 = vunpack.c.l.b16 %v151
    %v624 = vunpack.c.l.b16 %v152
    %v625 = vunpack.c.l.b16 %v153
    %v626 = vunpack.c.l.b16 %v154
    %v627 = vunpack.c.l.b16 %v155
    %v628 = vunpack.c.l.b16 %v156
    %v629 = vunpack.c.l.b16 %v157
    %v630 = vunpack.c.l.b16 %v158
    %v631 = vunpack.c.l.b16 %v159
    %v632 = vunpack.c.l.b16 %v160
    %v633 = vunpack.c.l.b16 %v161
    %v634 = vunpack.c.l.b16 %v162
    %v635 = vunpack.c.l.b16 %v163
    %v636 = vunpack.c.l.b16 %v164
    %v637 = vunpack.c.l.b16 %v165
    %v638 = vunpack.c.l.b16 %v166
    %v639 = vunpack.c.l.b16 %v167
    %v640 = vunpack.c.l.b16 %v168
    %v641 = vunpack.c.l.b16 %v169
    %v642 = vunpack.c.l.b16 %v170
    %v643 = vunpack.c.l.b16 %v171
    %v644 = vunpack.c.l.b16 %v172
    %v645 = vunpack.c.l.b16 %v173
    %v646 = vunpack.c.l.b16 %v174
    %v647 = vunpack.c.l.b16 %v175
    %v648 = vunpack.c.l.b16 %v176
    %v649 = vunpack.c.l.b16 %v177
    %v650 = vunpack.c.l.b16 %v178
    %v651 = vunpack.c.l.b16 %v179
    %v652 = vunpack.c.l.b16 %v180
    %v653 = vunpack.c.l.b16 %v181
    %v654 = vunpack.c.l.b16 %v182
    %v655 = vunpack.c.l.b16 %v183
    %v656 = vunpack.c.l.b16 %v184
    %v657 = vunpack.c.l.b16 %v185
    %v658 = vunpack.c.l.b16 %v186
    %v659 = vunpack.c.l.b16 %v187
    %v660 = vunpack.c.l.b16 %v188
    %v661 = vunpack.c.l.b16 %v189
    %v662 = vunpack.c.l.b16 %v190
    %v663 = vunpack.c.l.b16 %v191
    %v664 = vunpack.c.l.b16 %v192
    %v665 = vunpack.c.l.b16 %v193
    %v666 = vunpack.c.l.b16 %v194
    %v667 = vunpack.c.l.b16 %v195
    %v668 = vunpack.c.l.b16 %v196
    %v669 = vunpack.c.l.b16 %v197
    %v670 = vunpack.c.l.b16 %v198
    %v671 = vunpack.c.l.b16 %v199
    %v672 = vunpack.c.l.b16 %v200
    %v673 = vunpack.c.l.b16 %v201
    %v674 = vunpack.c.l.b16 %v202
    %v675 = vunpack.c.l.b16 %v203
    %v676 = vunpack.c.l.b16 %v204
    %v677 = vunpack.c.l.b16 %v205
    %v678 = vunpack.c.l.b16 %v206
    %v679 = vunpack.c.l.b16 %v207
    %v680 = vunpack.c.l.b16 %v208
    %v681 = vunpack.c.l.b16 %v209
    %v682 = vunpack.c.l.b16 %v210
    %v683 = vunpack.c.l.b16 %v211
    %v684 = vunpack.c.l.b16 %v212
    %v685 = vunpack.c.l.b16 %v213
    %v686 = vunpack.c.l.b16 %v214
    %v687 = vunpack.c.l.b16 %v215
    %v688 = vunpack.c.l.b16 %v216
    %v689 = vunpack.c.l.b16 %v217
    %v690 = vunpack.c.l.b16 %v218
    %v691 = vunpack.c.l.b16 %v219
    %v692 = vunpack.c.l.b16 %v220
    %v693 = vunpack.c.l.b16 %v221
    %v694 = vunpack.c.l.b16 %v222
    %v695 = vunpack.c.l.b16 %v223
    %v696 = vunpack.c.l.b16 %v224
    %v697 = vunpack.c.l.b16 %v225
    %v698 = vunpack.c.l.b16 %v226
    %v699 = vunpack.c.l.b16 %v227
    %v700 = vunpack.c.l.b16 %v228
    %v701 = vunpack.c.l.b16 %v229
    %v702 = vunpack.c.l.b16 %v230
    %v703 = vunpack.c.l.b16 %v231
    %v704 = vunpack.c.l.b16 %v232
    %v705 = vunpack.c.l.b16 %v233
    %v706 = vunpack.c.l.b16 %v234
    %v707 = vunpack.c.l.b16 %v235
    %v708 = vunpack.c.l.b16 %v236
    %v709 = vunpack.c.l.b16 %v237
    %v710 = vunpack.c.l.b16 %v238
    %v711 = vunpack.c.l.b16 %v239
    %v712 = vunpack.c.l.b16 %v240
    %v713 = vunpack.c.l.b16 %v241
    %v714 = vunpack.c.l.b16 %v242
    %v715 = vunpack.c.l.b16 %v243
    %v716 = vunpack.c.l.b16 %v244
    %v717 = vunpack.c.l.b16 %v245
    %v718 = vunpack.c.l.b16 %v246
    %v719 = vunpack.c.l.b16 %v247
    %v720 = vunpack.c.l.b16 %v248
    %v721 = vunpack.c.l.b16 %v249
    %v722 = vunpack.c.l.b16 %v250
    %v723 = vunpack.c.l.b16 %v251
    %v724 = vunpack.c.l.b16 %v252
    %v725 = vunpack.c.l.b16 %v253
    %v726 = vunpack.c.l.b16 %v254
    %v727 = vunpack.c.l.b16 %v255
    %v728 = vunpack.c.l.b16 %v256
    %v729 = vunpack.c.l.b16 %v257
    %v730 = vunpack.c.l.b16 %v258
    %v731 = vunpack.c.l.b16 %v259
    %v732 = vunpack.c.l.b16 %v260
    %v733 = vunpack.c.l.b16 %v261
    %v734 = vpack.c.b16 %v543, %v542
    %v735 = vpack.c.b16 %v545, %v544
    %v736 = vpack.c.b16 %v547, %v546
    %v737 = vpack.c.b16 %v549, %v548
    %v738 = vpack.c.b16 %v551, %v550
    %v739 = vpack.c.b16 %v553, %v552
    %v740 = vpack.c.b16 %v555, %v554
    %v741 = vpack.c.b16 %v557, %v556
    %v742 = vpack.c.b16 %v559, %v558
    %v743 = vpack.c.b16 %v561, %v560
    %v744 = vpack.c.b16 %v563, %v562
    %v745 = vpack.c.b16 %v565, %v564
    %v746 = vpack.c.b16 %v567, %v566
    %v747 = vpack.c.b16 %v569, %v568
    %v748 = vpack.c.b16 %v571, %v570
    %v749 = vpack.c.b16 %v573, %v572
    %v750 = vpack.c.b16 %v575, %v574
    %v751 = vpack.c.b16 %v577, %v576
    %v752 = vpack.c.b16 %v579, %v578
    %v753 = vpack.c.b16 %v581, %v580
    %v754 = vpack.c.b16 %v583, %v582
    %v755 = vpack.c.b16 %v585, %v584
    %v756 = vpack.c.b16 %v587, %v586
    %v757 = vpack.c.b16 %v589, %v588
    %v758 = vpack.c.b16 %v591, %v590
    %v759 = vpack.c.b16 %v593, %v592
    %v760 = vpack.c.b16 %v595, %v594
    %v761 = vpack.c.b16 %v597, %v596
    %v762 = vpack.c.b16 %v599, %v598
    %v763 = vpack.c.b16 %v601, %v600
    %v764 = vpack.c.b16 %v603, %v602
    %v765 = vpack.c.b16 %v605, %v604
    %v766 = vpack.c.b16 %v607, %v606
    %v767 = vpack.c.b16 %v609, %v608
    %v768 = vpack.c.b16 %v611, %v610
    %v769 = vpack.c.b16 %v613, %v612
    %v770 = vpack.c.b16 %v615, %v614
    %v771 = vpack.c.b16 %v617, %v616
    %v772 = vpack.c.b16 %v619, %v618
    %v773 = vpack.c.b16 %v621, %v620
    %v774 = vpack.c.b16 %v623, %v622
    %v775 = vpack.c.b16 %v625, %v624
    %v776 = vpack.c.b16 %v627, %v626
    %v777 = vpack.c.b16 %v629, %v628
    %v778 = vpack.c.b16 %v631, %v630
    %v779 = vpack.c.b16 %v633, %v632
    %v780 = vpack.c.b16 %v635, %v634
    %v781 = vpack.c.b16 %v637, %v636
    %v782 = vpack.c.b16 %v639, %v638
    %v783 = vpack.c.b16 %v641, %v640
    %v784 = vpack.c.b16 %v643, %v642
    %v785 = vpack.c.b16 %v645, %v644
    %v786 = vpack.c.b16 %v647, %v646
    %v787 = vpack.c.b16 %v649, %v648
    %v788 = vpack.c.b16 %v651, %v650
    %v789 = vpack.c.b16 %v653, %v652
    %v790 = vpack.c.b16 %v655, %v654
    %v791 = vpack.c.b16 %v657, %v656
    %v792 = vpack.c.b16 %v659, %v658
    %v793 = vpack.c.b16 %v661, %v660
    %v794 = vpack.c.b16 %v663, %v662
    %v795 = vpack.c.b16 %v665, %v664
    %v796 = vpack.c.b16 %v667, %v666
    %v797 = vpack.c.b16 %v669, %v668
    %v798 = vpack.c.b16 %v671, %v670
    %v799 = vpack.c.b16 %v673, %v672
    %v800 = vpack.c.b16 %v675, %v674
    %v801 = vpack.c.b16 %v677, %v676
    %v802 = vpack.c.b16 %v679, %v678
    %v803 = vpack.c.b16 %v681, %v680
    %v804 = vpack.c.b16 %v683, %v682
    %v805 = vpack.c.b16 %v685, %v684
    %v806 = vpack.c.b16 %v687, %v686
    %v807 = vpack.c.b16 %v689, %v688
    %v808 = vpack.c.b16 %v691, %v690
    %v809 = vpack.c.b16 %v693, %v692
    %v810 = vpack.c.b16 %v695, %v694
    %v811 = vpack.c.b16 %v697, %v696
    %v812 = vpack.c.b16 %v699, %v698
    %v813 = vpack.c.b16 %v701, %v700
    %v814 = vpack.c.b16 %v703, %v702
    %v815 = vpack.c.b16 %v705, %v704
    %v816 = vpack.c.b16 %v707, %v706
    %v817 = vpack.c.b16 %v709, %v708
    %v818 = vpack.c.b16 %v711, %v710
    %v819 = vpack.c.b16 %v713, %v712
    %v820 = vpack.c.b16 %v715, %v714
    %v821 = vpack.c.b16 %v717, %v716
    %v822 = vpack.c.b16 %v719, %v718
    %v823 = vpack.c.b16 %v721, %v720
    %v824 = vpack.c.b16 %v723, %v722
    %v825 = vpack.c.b16 %v725, %v724
    %v826 = vpack.c.b16 %v727, %v726
    %v827 = vpack.c.b16 %v729, %v728
    %v828 = vpack.c.b16 %v731, %v730
    %v829 = vpack.c.b16 %v733, %v732
    %926 = vmatprep.subr.bf16.mxu0 0
    %927 = vmatpush1.bf16.msra.mxu0 %v734
    %928 = vmatprep.subr.bf16.mxu0 0
    %929 = vmatpush1.bf16.msra.mxu0 %v735
    %930 = vmatprep.subr.bf16.mxu0 0
    %931 = vmatpush1.bf16.msra.mxu0 %v736
    %932 = vmatprep.subr.bf16.mxu0 0
    %933 = vmatpush1.bf16.msra.mxu0 %v737
    %934 = vmatprep.subr.bf16.mxu0 0
    %935 = vmatpush1.bf16.msra.mxu0 %v738
    %936 = vmatprep.subr.bf16.mxu0 0
    %937 = vmatpush1.bf16.msra.mxu0 %v739
    %938 = vmatprep.subr.bf16.mxu0 0
    %939 = vmatpush1.bf16.msra.mxu0 %v740
    %940 = vmatprep.subr.bf16.mxu0 0
    %941 = vmatpush1.bf16.msra.mxu0 %v741
    %942 = vmatprep.subr.bf16.mxu0 0
    %943 = vmatpush1.bf16.msra.mxu0 %v742
    %944 = vmatprep.subr.bf16.mxu0 0
    %945 = vmatpush1.bf16.msra.mxu0 %v743
    %946 = vmatprep.subr.bf16.mxu0 0
    %947 = vmatpush1.bf16.msra.mxu0 %v744
    %948 = vmatprep.subr.bf16.mxu0 0
    %949 = vmatpush1.bf16.msra.mxu0 %v745
    %950 = vmatprep.subr.bf16.mxu0 0
    %951 = vmatpush1.bf16.msra.mxu0 %v746
    %952 = vmatprep.subr.bf16.mxu0 0
    %953 = vmatpush1.bf16.msra.mxu0 %v747
    %954 = vmatprep.subr.bf16.mxu0 0
    %955 = vmatpush1.bf16.msra.mxu0 %v748
    %956 = vmatprep.subr.bf16.mxu0 0
    %957 = vmatpush1.bf16.msra.mxu0 %v749
    %958 = vmatprep.mubr.bf16.mxu0 %v302
    %959 = vmatmul.mubr.bf16.gmra.mrb[0].mxu0 %v288
    %v960 = vpop.f32.mrb[0].mxu0
    %v961 = vadd.f32 %v262, %v960
    %v962 = vpop.f32.mrb[0].mxu0
    %v963 = vpop.f32.mrb[0].mxu0
    %v964 = vpop.f32.mrb[0].mxu0
    %965 = vdwg.mxu0
    %966 = vmatprep.subr.bf16.mxu0 0
    %967 = vmatpush1.bf16.msra.mxu0 %v750
    %968 = vmatprep.subr.bf16.mxu0 0
    %969 = vmatpush1.bf16.msra.mxu0 %v751
    %970 = vmatprep.subr.bf16.mxu0 0
    %971 = vmatpush1.bf16.msra.mxu0 %v752
    %972 = vmatprep.subr.bf16.mxu0 0
    %973 = vmatpush1.bf16.msra.mxu0 %v753
    %974 = vmatprep.subr.bf16.mxu0 0
    %975 = vmatpush1.bf16.msra.mxu0 %v754
    %976 = vmatprep.subr.bf16.mxu0 0
    %977 = vmatpush1.bf16.msra.mxu0 %v755
    %978 = vmatprep.subr.bf16.mxu0 0
    %979 = vmatpush1.bf16.msra.mxu0 %v756
    %980 = vmatprep.subr.bf16.mxu0 0
    %981 = vmatpush1.bf16.msra.mxu0 %v757
    %982 = vmatprep.subr.bf16.mxu0 0
    %983 = vmatpush1.bf16.msra.mxu0 %v758
    %984 = vmatprep.subr.bf16.mxu0 0
    %985 = vmatpush1.bf16.msra.mxu0 %v759
    %986 = vmatprep.subr.bf16.mxu0 0
    %987 = vmatpush1.bf16.msra.mxu0 %v760
    %988 = vmatprep.subr.bf16.mxu0 0
    %989 = vmatpush1.bf16.msra.mxu0 %v761
    %990 = vmatprep.subr.bf16.mxu0 0
    %991 = vmatpush1.bf16.msra.mxu0 %v762
    %992 = vmatprep.subr.bf16.mxu0 0
    %993 = vmatpush1.bf16.msra.mxu0 %v763
    %994 = vmatprep.subr.bf16.mxu0 0
    %995 = vmatpush1.bf16.msra.mxu0 %v764
    %996 = vmatprep.subr.bf16.mxu0 0
    %997 = vmatpush1.bf16.msra.mxu0 %v765
    %998 = vmatprep.mubr.bf16.mxu0 %v312
    %999 = vmatmul.mubr.bf16.gmra.mrb[0].mxu0 %v310
    %v1000 = vpop.f32.mrb[0].mxu0
    %v1001 = vadd.f32 %v961, %v1000
    %v1002 = vpop.f32.mrb[0].mxu0
    %v1003 = vpop.f32.mrb[0].mxu0
    %v1004 = vpop.f32.mrb[0].mxu0
    %1005 = vdwg.mxu0
    %1006 = vmatprep.subr.bf16.mxu0 0
    %1007 = vmatpush1.bf16.msra.mxu0 %v766
    %1008 = vmatprep.subr.bf16.mxu0 0
    %1009 = vmatpush1.bf16.msra.mxu0 %v767
    %1010 = vmatprep.subr.bf16.mxu0 0
    %1011 = vmatpush1.bf16.msra.mxu0 %v768
    %1012 = vmatprep.subr.bf16.mxu0 0
    %1013 = vmatpush1.bf16.msra.mxu0 %v769
    %1014 = vmatprep.subr.bf16.mxu0 0
    %1015 = vmatpush1.bf16.msra.mxu0 %v770
    %1016 = vmatprep.subr.bf16.mxu0 0
    %1017 = vmatpush1.bf16.msra.mxu0 %v771
    %1018 = vmatprep.subr.bf16.mxu0 0
    %1019 = vmatpush1.bf16.msra.mxu0 %v772
    %1020 = vmatprep.subr.bf16.mxu0 0
    %1021 = vmatpush1.bf16.msra.mxu0 %v773
    %1022 = vmatprep.subr.bf16.mxu0 0
    %1023 = vmatpush1.bf16.msra.mxu0 %v774
    %1024 = vmatprep.subr.bf16.mxu0 0
    %1025 = vmatpush1.bf16.msra.mxu0 %v775
    %1026 = vmatprep.subr.bf16.mxu0 0
    %1027 = vmatpush1.bf16.msra.mxu0 %v776
    %1028 = vmatprep.subr.bf16.mxu0 0
    %1029 = vmatpush1.bf16.msra.mxu0 %v777
    %1030 = vmatprep.subr.bf16.mxu0 0
    %1031 = vmatpush1.bf16.msra.mxu0 %v778
    %1032 = vmatprep.subr.bf16.mxu0 0
    %1033 = vmatpush1.bf16.msra.mxu0 %v779
    %1034 = vmatprep.subr.bf16.mxu0 0
    %1035 = vmatpush1.bf16.msra.mxu0 %v780
    %1036 = vmatprep.subr.bf16.mxu0 0
    %1037 = vmatpush1.bf16.msra.mxu0 %v781
    %1038 = vmatprep.mubr.bf16.mxu0 %v309
    %1039 = vmatmul.mubr.bf16.gmra.mrb[0].mxu0 %v295
    %v1040 = vpop.f32.mrb[0].mxu0
    %v1041 = vadd.f32 %v1001, %v1040
    %v1042 = vpop.f32.mrb[0].mxu0
    %v1043 = vpop.f32.mrb[0].mxu0
    %v1044 = vpop.f32.mrb[0].mxu0
    %1045 = vdwg.mxu0
    %1046 = vmatprep.subr.bf16.mxu0 0
    %1047 = vmatpush1.bf16.msra.mxu0 %v782
    %1048 = vmatprep.subr.bf16.mxu0 0
    %1049 = vmatpush1.bf16.msra.mxu0 %v783
    %1050 = vmatprep.subr.bf16.mxu0 0
    %1051 = vmatpush1.bf16.msra.mxu0 %v784
    %1052 = vmatprep.subr.bf16.mxu0 0
    %1053 = vmatpush1.bf16.msra.mxu0 %v785
    %1054 = vmatprep.subr.bf16.mxu0 0
    %1055 = vmatpush1.bf16.msra.mxu0 %v786
    %1056 = vmatprep.subr.bf16.mxu0 0
    %1057 = vmatpush1.bf16.msra.mxu0 %v787
    %1058 = vmatprep.subr.bf16.mxu0 0
    %1059 = vmatpush1.bf16.msra.mxu0 %v788
    %1060 = vmatprep.subr.bf16.mxu0 0
    %1061 = vmatpush1.bf16.msra.mxu0 %v789
    %1062 = vmatprep.subr.bf16.mxu0 0
    %1063 = vmatpush1.bf16.msra.mxu0 %v790
    %1064 = vmatprep.subr.bf16.mxu0 0
    %1065 = vmatpush1.bf16.msra.mxu0 %v791
    %1066 = vmatprep.subr.bf16.mxu0 0
    %1067 = vmatpush1.bf16.msra.mxu0 %v792
    %1068 = vmatprep.subr.bf16.mxu0 0
    %1069 = vmatpush1.bf16.msra.mxu0 %v793
    %1070 = vmatprep.subr.bf16.mxu0 0
    %1071 = vmatpush1.bf16.msra.mxu0 %v794
    %1072 = vmatprep.subr.bf16.mxu0 0
    %1073 = vmatpush1.bf16.msra.mxu0 %v795
    %1074 = vmatprep.subr.bf16.mxu0 0
    %1075 = vmatpush1.bf16.msra.mxu0 %v796
    %1076 = vmatprep.subr.bf16.mxu0 0
    %1077 = vmatpush1.bf16.msra.mxu0 %v797
    %1078 = vmatprep.mubr.bf16.mxu0 %v313
    %1079 = vmatmul.mubr.bf16.gmra.mrb[0].mxu0 %v311
    %v1080 = vpop.f32.mrb[0].mxu0
    %v1081 = vadd.f32 %v1041, %v1080
    %v1082 = vpop.f32.mrb[0].mxu0
    %v1083 = vpop.f32.mrb[0].mxu0
    %v1084 = vpop.f32.mrb[0].mxu0
    %1085 = vdwg.mxu0
    %1086 = vmatprep.subr.bf16.mxu0 0
    %1087 = vmatpush1.bf16.msra.mxu0 %v798
    %1088 = vmatprep.subr.bf16.mxu0 0
    %1089 = vmatpush1.bf16.msra.mxu0 %v799
    %1090 = vmatprep.subr.bf16.mxu0 0
    %1091 = vmatpush1.bf16.msra.mxu0 %v800
    %1092 = vmatprep.subr.bf16.mxu0 0
    %1093 = vmatpush1.bf16.msra.mxu0 %v801
    %1094 = vmatprep.subr.bf16.mxu0 0
    %1095 = vmatpush1.bf16.msra.mxu0 %v802
    %1096 = vmatprep.subr.bf16.mxu0 0
    %1097 = vmatpush1.bf16.msra.mxu0 %v803
    %1098 = vmatprep.subr.bf16.mxu0 0
    %1099 = vmatpush1.bf16.msra.mxu0 %v804
    %1100 = vmatprep.subr.bf16.mxu0 0
    %1101 = vmatpush1.bf16.msra.mxu0 %v805
    %1102 = vmatprep.subr.bf16.mxu0 0
    %1103 = vmatpush1.bf16.msra.mxu0 %v806
    %1104 = vmatprep.subr.bf16.mxu0 0
    %1105 = vmatpush1.bf16.msra.mxu0 %v807
    %1106 = vmatprep.subr.bf16.mxu0 0
    %1107 = vmatpush1.bf16.msra.mxu0 %v808
    %1108 = vmatprep.subr.bf16.mxu0 0
    %1109 = vmatpush1.bf16.msra.mxu0 %v809
    %1110 = vmatprep.subr.bf16.mxu0 0
    %1111 = vmatpush1.bf16.msra.mxu0 %v810
    %1112 = vmatprep.subr.bf16.mxu0 0
    %1113 = vmatpush1.bf16.msra.mxu0 %v811
    %1114 = vmatprep.subr.bf16.mxu0 0
    %1115 = vmatpush1.bf16.msra.mxu0 %v812
    %1116 = vmatprep.subr.bf16.mxu0 0
    %1117 = vmatpush1.bf16.msra.mxu0 %v813
    %1118 = vmatprep.mubr.bf16.mxu0 %v335
    %1119 = vmatmul.mubr.bf16.gmra.mrb[0].mxu0 %v328
    %v1120 = vpop.f32.mrb[0].mxu0
    %v1121 = vadd.f32 %v1081, %v1120
    %v1122 = vpop.f32.mrb[0].mxu0
    %v1123 = vpop.f32.mrb[0].mxu0
    %v1124 = vpop.f32.mrb[0].mxu0
    %1125 = vdwg.mxu0
    %1126 = vmatprep.subr.bf16.mxu0 0
    %1127 = vmatpush1.bf16.msra.mxu0 %v814
    %1128 = vmatprep.subr.bf16.mxu0 0
    %1129 = vmatpush1.bf16.msra.mxu0 %v815
    %1130 = vmatprep.subr.bf16.mxu0 0
    %1131 = vmatpush1.bf16.msra.mxu0 %v816
    %1132 = vmatprep.subr.bf16.mxu0 0
    %1133 = vmatpush1.bf16.msra.mxu0 %v817
    %1134 = vmatprep.subr.bf16.mxu0 0
    %1135 = vmatpush1.bf16.msra.mxu0 %v818
    %1136 = vmatprep.subr.bf16.mxu0 0
    %1137 = vmatpush1.bf16.msra.mxu0 %v819
    %1138 = vmatprep.subr.bf16.mxu0 0
    %1139 = vmatpush1.bf16.msra.mxu0 %v820
    %1140 = vmatprep.subr.bf16.mxu0 0
    %1141 = vmatpush1.bf16.msra.mxu0 %v821
    %1142 = vmatprep.subr.bf16.mxu0 0
    %1143 = vmatpush1.bf16.msra.mxu0 %v822
    %1144 = vmatprep.subr.bf16.mxu0 0
    %1145 = vmatpush1.bf16.msra.mxu0 %v823
    %1146 = vmatprep.subr.bf16.mxu0 0
    %1147 = vmatpush1.bf16.msra.mxu0 %v824
    %1148 = vmatprep.subr.bf16.mxu0 0
    %1149 = vmatpush1.bf16.msra.mxu0 %v825
    %1150 = vmatprep.subr.bf16.mxu0 0
    %1151 = vmatpush1.bf16.msra.mxu0 %v826
    %1152 = vmatprep.subr.bf16.mxu0 0
    %1153 = vmatpush1.bf16.msra.mxu0 %v827
    %1154 = vmatprep.subr.bf16.mxu0 0
    %1155 = vmatpush1.bf16.msra.mxu0 %v828
    %1156 = vmatprep.subr.bf16.mxu0 0
    %1157 = vmatpush1.bf16.msra.mxu0 %v829
    %1158 = vmatprep.mubr.bf16.mxu0 %v337
    %1159 = vmatmul.mubr.bf16.gmra.mrb[0].mxu0 %v336
    %v1160 = vpop.f32.mrb[0].mxu0
    %v1161 = vadd.f32 %v1121, %v1160
    %v1162 = vpop.f32.mrb[0].mxu0
    %v1163 = vpop.f32.mrb[0].mxu0
    %v1164 = vpop.f32.mrb[0].mxu0
    %1165 = vdwg.mxu0
    %v1166 = vmul.f32 %v1161, %v1161
    %vm1167 = vcmask 1040384
    %v1168 = vsel %vm1167, %v1166, 0.0
    %1169 = vadd.xlane.f32.xlu0 %v1168
    %v1170 = vpop.xlane.xlu0 %1169
    %v1171 = vmax.f32 %v1170, 1e-24
    %v1172 = vrsqrt.pop %v1171
    %v1173 = vmul.f32 %v1161, %v1172
    %v1174 = vlaneseq
    %v1175 = vshrl.u32 %v1174, 7
    %v1176 = vsub.s32 0, %v1175
    %v1177 = vrot.slane %v1173, %v1176
    %v1178 = vsub.f32 %v67, %v1177
    %v1179 = vld [vmem:[%s5] sm:$0x1]
    %v1181 = vlaneseq
    %v1182 = vshrl.u32 %v1181, 7
    %v1183 = vsub.s32 0, %v1182
    %v1184 = vrot.slane %v1179, %v1183
    %v1186 = vmul.f32 %v1178, %v1184
    %v1187 = vsel %vm61, %v1186, 0.0
    %1188 = vadd.xlane.f32.xlu0 %v1187
    %v1189 = vpop.xlane.xlu0 %1188
    %vm1190 = vcmask 1024
    %1191 = vst.msk [vmem:[%s6] sm:$0x3] %vm1190, %v1189
    // Predicated region
    $region34: #{mf_model_forward.1} parent=1 // pred_check
      _
    $region35: #{mf_model_forward.1} parent=1 // pred_check_branch
      %1193 = sbr.rel (0) target = $region37
    $region36: #{mf_model_forward.1} parent=1 // pred_region
      _
    $region37: #{mf_model_forward.1} parent=1 // pred_fallthru
      _
    // Predicated region
    $region38: #{mf_model_forward.1} parent=1 // pred_check
      _
    $region39: #{mf_model_forward.1} parent=1 // pred_check_branch
      %1195 = sbr.rel (0) target = $region41
    $region40: #{mf_model_forward.1} parent=1 // pred_region
      _
    $region41: #{mf_model_forward.1} parent=1 // pred_fallthru
      _
    %1196 = vsyncpa [#allocation4], 1
    %1197 = vsyncpa [#allocation5], 1

</llo_original>
